<compile_context>
chip_gen: v5e
topology: v5e:2x2
jax: 0.10.0
libtpu: 0.0.40
codegen_flags: <defaults>
</compile_context>

<pallas_src>
import jax
import jax.numpy as jnp
from jax.experimental import pallas as pl
from jax.experimental.pallas import tpu as pltpu

# ----------------------------- model dimensions -----------------------------
PROTEIN_DIM = 32
DRUG_DIM = 32
HIDDEN_DIM = 32
ATTENTION_DIM = 16
CAPSULE_DIM = 16          # must equal ATTENTION_DIM for the concat arithmetic
NUM_CAPSULES = 8
CAPS_WIDE = NUM_CAPSULES * CAPSULE_DIM          # 128

CROSS_DIM = max(PROTEIN_DIM, DRUG_DIM) * 3      # 96
OUTPUT_DIM = PROTEIN_DIM + DRUG_DIM + 1 + ATTENTION_DIM + ATTENTION_DIM * 2  # 113
FC1_DIM = OUTPUT_DIM // 2   # 56
FC2_DIM = OUTPUT_DIM // 4   # 28

VOCAB = 26
PROT_EMB = 16
ACT_DIM = PROT_EMB + HIDDEN_DIM                 # 48 (fused kernel input width)
ENC_DIM = PROTEIN_DIM + DRUG_DIM                # 64

INV_SQRT_ATT = 1.0 / float(ATTENTION_DIM) ** 0.5


def _round_up(x, m):
    return (x + m - 1) // m * m


# ------------- packed-slab lane offsets (all 128-aligned starts) -------------
# slab A (K=32): [ p-fused | d-fused | wc1x | wc2 ]
WP_W = CAPS_WIDE + ATTENTION_DIM + HIDDEN_DIM + FC1_DIM                 # 232
WD_W = CAPS_WIDE + 2 * ATTENTION_DIM + HIDDEN_DIM + FC1_DIM             # 248
A_WP, A_WD, A_WX, A_WC2 = 0, 256, 512, 640
A_W = 768
# segment offsets inside the fused p / d projections
PP_UP, PP_Q, PP_CH, PP_H1 = 0, 128, 144, 176
DP_UD, DP_K, DP_V, DP_CH, DP_H1 = 0, 128, 144, 160, 192
# slab B (K=16): fc1 weight blocks for [attn | p_caps | d_caps]
B_W1A, B_W1PC, B_W1DC = 0, 128, 256
B_W = 384
# slab C (K=128): capsule selector matrices
C_SQ, C_SUM = 0, 128
C_W = 256
# bias / elementwise-operand slab (f32)
BO_ENC, BO_P, BO_D, BO_C1, BO_C2 = 0, 128, 384, 640, 768
BO_W1C, BO_B1, BO_B2, BO_B3 = 896, 1024, 1152, 1280
BIAS_W = 1408


# ------------------------------ Pallas kernel -------------------------------
def head_kernel(x_ref, wenc_ref, wa_ref, wb_ref, wc_ref, wexp_ref,
                w2_ref, w3_ref, bias_ref, out_ref):
    bf16, f32 = jnp.bfloat16, jnp.float32

    def mm(lhs_bf, rhs_bf):
        # bf16 MXU inputs, f32 accumulation (valid on v5e/v6e/v7x).
        return jnp.dot(lhs_bf, rhs_bf, preferred_element_type=f32)

    x = x_ref[...]                                                     # (TB, 48) bf16

    # ---- encoder readouts: one block-diagonal matmul --------------------------
    enc = mm(x, wenc_ref[...]) + bias_ref[:, BO_ENC:BO_ENC + ENC_DIM]  # (TB, 64)
    p = jnp.maximum(enc[:, :PROTEIN_DIM], 0.0)                         # (TB, 32) f32
    d = enc[:, PROTEIN_DIM:]                                           # (TB, 32) f32

    # hoisted bf16 casts: each matmul LHS is cast exactly once
    p_bf = p.astype(bf16)
    d_bf = d.astype(bf16)
    pd_bf = (p * d).astype(bf16)

    # ---- fused shared-LHS projections -----------------------------------------
    #   p lanes: [capsules(128) | q(16) | cross-ch(32) | fc1(56)]
    #   d lanes: [capsules(128) | k(16) | v(16) | cross-ch(32) | fc1(56)]
    pproj = mm(p_bf, wa_ref[:, A_WP:A_WP + WP_W]) + bias_ref[:, BO_P:BO_P + WP_W]
    dproj = mm(d_bf, wa_ref[:, A_WD:A_WD + WD_W]) + bias_ref[:, BO_D:BO_D + WD_W]

    # ---- CrossLayer: concat([p, d, p*d]) @ Wc1 rewritten as split matmuls ------
    ch = jnp.maximum(
        pproj[:, PP_CH:PP_CH + HIDDEN_DIM]
        + dproj[:, DP_CH:DP_CH + HIDDEN_DIM]
        + mm(pd_bf, wa_ref[:, A_WX:A_WX + HIDDEN_DIM])
        + bias_ref[:, BO_C1:BO_C1 + HIDDEN_DIM], 0.0)                  # (TB, 32)
    cross = (mm(ch.astype(bf16), wa_ref[:, A_WC2:A_WC2 + 1])
             + bias_ref[:, BO_C2:BO_C2 + 1])                           # (TB, 1)

    # ---- CrossAttention: elementwise q*k, softmax over the feature axis --------
    q = pproj[:, PP_Q:PP_Q + ATTENTION_DIM]
    k = dproj[:, DP_K:DP_K + ATTENTION_DIM]
    v = dproj[:, DP_V:DP_V + ATTENTION_DIM]
    scores = (q * k) * INV_SQRT_ATT
    scores = scores - jnp.max(scores, axis=-1, keepdims=True)
    e = jnp.exp(scores)
    attn = e * pl.reciprocal(jnp.sum(e, axis=-1, keepdims=True), approx=True)
    attn_out = attn * v                                                # (TB, 16)

    # ---- CapsuleLayer: squash vectorized with constant selector matmuls --------
    sel_sq = wc_ref[:, C_SQ:C_SQ + NUM_CAPSULES]                       # (128, 8)
    sel_sum = wc_ref[:, C_SUM:C_SUM + CAPSULE_DIM]                     # (128, 16)
    sel_exp = wexp_ref[...]                                            # (8, 128)

    def capsule(u):
        ssq = mm((u * u).astype(bf16), sel_sq)                         # (TB, 8)
        scale = (ssq * jax.lax.rsqrt(ssq + 1e-8)
                 * pl.reciprocal(1.0 + ssq, approx=True))              # (TB, 8)
        wide = mm(scale.astype(bf16), sel_exp)                         # (TB, 128)
        acc = mm((u * wide).astype(bf16), sel_sum)                     # (TB, 16)
        return acc * (1.0 / NUM_CAPSULES)

    p_caps = capsule(pproj[:, PP_UP:PP_UP + CAPS_WIDE])
    d_caps = capsule(dproj[:, DP_UD:DP_UD + CAPS_WIDE])

    # TODO(synk): SelfAttentionLayer(drug_embedding) is computed in the reference
    # forward but its output is never used in `combined`; omitted here.

    # ---- concat-free MLP head (fc1 weight split row-wise per segment) ----------
    h1 = (pproj[:, PP_H1:PP_H1 + FC1_DIM]
          + dproj[:, DP_H1:DP_H1 + FC1_DIM]
          + cross * bias_ref[:, BO_W1C:BO_W1C + FC1_DIM]
          + mm(attn_out.astype(bf16), wb_ref[:, B_W1A:B_W1A + FC1_DIM])
          + mm(p_caps.astype(bf16), wb_ref[:, B_W1PC:B_W1PC + FC1_DIM])
          + mm(d_caps.astype(bf16), wb_ref[:, B_W1DC:B_W1DC + FC1_DIM])
          + bias_ref[:, BO_B1:BO_B1 + FC1_DIM])
    h1 = jnp.maximum(h1, 0.0)
    h2 = jnp.maximum(mm(h1.astype(bf16), w2_ref[...])
                     + bias_ref[:, BO_B2:BO_B2 + FC2_DIM], 0.0)
    # (TB, 1) output: masked lane store, acceptable (tiny byte count).
    out_ref[...] = mm(h2.astype(bf16), w3_ref[...]) + bias_ref[:, BO_B3:BO_B3 + 1]


# ------------------------ weight packing for the kernel ----------------------
def _pack_head_weights(params):
    bf16, f32 = jnp.bfloat16, jnp.float32
    P, D = PROTEIN_DIM, DRUG_DIM

    def place(slab, off, m):
        return slab.at[:, off:off + m.shape[1]].set(m.astype(slab.dtype))

    # Encoder readouts as one block-diagonal matmul weight.
    wenc = jnp.zeros((ACT_DIM, ENC_DIM), f32)
    wenc = wenc.at[:PROT_EMB, :P].set(params["prot_w"])
    wenc = wenc.at[PROT_EMB:, P:].set(params["gnn_wout"])

    # CrossLayer Wc1 split into [p | d | p*d] row blocks (kills the concat).
    wc1 = params["wc1"]
    wc1p, wc1d, wc1x = wc1[:P], wc1[P:P + D], wc1[P + D:]

    # fc1 weight split row-wise by segment of the (never materialized) concat:
    # [p(32) | d(32) | cross(1) | attn(16) | p_caps(16) | d_caps(16)]
    w1 = params["w1"]
    o1, o2, o3 = P, P + D, P + D + 1
    o4, o5 = o3 + ATTENTION_DIM, o3 + ATTENTION_DIM + CAPSULE_DIM
    w1p, w1d, w1c = w1[:o1], w1[o1:o2], w1[o2:o3]
    w1a, w1pc, w1dc = w1[o3:o4], w1[o4:o5], w1[o5:]

    # Fused shared-LHS RHS blocks.
    wp_f = jnp.concatenate([params["wpc"], params["wq"], wc1p, w1p], axis=1)   # (32, 232)
    wd_f = jnp.concatenate([params["wdc"], params["wk"], params["wv"],
                            wc1d, w1d], axis=1)                                # (32, 248)

    # Slab A (K=32) — every segment starts at a 128-aligned lane offset.
    slab_a = jnp.zeros((32, A_W), bf16)
    slab_a = place(slab_a, A_WP, wp_f)
    slab_a = place(slab_a, A_WD, wd_f)
    slab_a = place(slab_a, A_WX, wc1x)
    slab_a = place(slab_a, A_WC2, params["wc2"])

    # Slab B (K=16) — fc1 blocks for attn / p_caps / d_caps.
    slab_b = jnp.zeros((16, B_W), bf16)
    slab_b = place(slab_b, B_W1A, w1a)
    slab_b = place(slab_b, B_W1PC, w1pc)
    slab_b = place(slab_b, B_W1DC, w1dc)

    # Slab C (K=128) — constant 0/1 selector matrices for the capsule squash.
    lane = jnp.arange(CAPS_WIDE)
    sel_sq = (lane[:, None] // CAPSULE_DIM
              == jnp.arange(NUM_CAPSULES)[None, :]).astype(f32)                # (128, 8)
    sel_sum = (lane[:, None] % CAPSULE_DIM
               == jnp.arange(CAPSULE_DIM)[None, :]).astype(f32)                # (128, 16)
    sel_exp = jnp.transpose(sel_sq)                                            # (8, 128)
    slab_c = jnp.zeros((128, C_W), bf16)
    slab_c = place(slab_c, C_SQ, sel_sq)
    slab_c = place(slab_c, C_SUM, sel_sum)

    # Bias / elementwise-operand slab (f32), 128-aligned segment starts.
    bias = jnp.zeros((1, BIAS_W), f32)
    bias = place(bias, BO_ENC, jnp.concatenate([params["prot_b"],
                                                params["gnn_bout"]], axis=1))
    bias = place(bias, BO_P, jnp.concatenate([params["bpc"], params["bq"]], axis=1))
    bias = place(bias, BO_D, jnp.concatenate([params["bdc"], params["bk"],
                                              params["bv"]], axis=1))
    bias = place(bias, BO_C1, params["bc1"])
    bias = place(bias, BO_C2, params["bc2"])
    bias = place(bias, BO_W1C, w1c)
    bias = place(bias, BO_B1, params["b1"])
    bias = place(bias, BO_B2, params["b2"])
    bias = place(bias, BO_B3, params["b3"])

    return (wenc.astype(bf16), slab_a, slab_b, slab_c, sel_exp.astype(bf16),
            params["w2"].astype(bf16), params["w3"].astype(bf16), bias)


def head_pallas(p_pool, d_pool, params, *, block_b=1024):
    B = p_pool.shape[0]
    B8 = _round_up(B, 8)
    TB = min(block_b, B8)
    # v7x: keep >=2 grid steps whenever the batch allows so the "parallel" batch
    # axis actually shards across both TensorCores (harmless on v5e/v6e).
    TB = min(TB, max(8, _round_up((B8 + 1) // 2, 8)))
    Bp = _round_up(B8, TB)

    # Fused bf16 activation slab: the kernel's only streamed HBM input.
    x = jnp.concatenate([p_pool, d_pool], axis=-1).astype(jnp.bfloat16)  # (B, 48)
    if Bp != B:
        x = jnp.pad(x, ((0, Bp - B), (0, 0)))

    flat = _pack_head_weights(params)
    grid = (Bp // TB,)

    in_specs = [pl.BlockSpec((TB, ACT_DIM), lambda i: (i, 0))]
    # Weight slabs: full-array blocks, same block every step -> VMEM resident.
    in_specs += [pl.BlockSpec(w.shape, lambda i: (0, 0)) for w in flat]

    out = pl.pallas_call(
        head_kernel,
        out_shape=jax.ShapeDtypeStruct((Bp, 1), jnp.float32),
        grid=grid,
        in_specs=in_specs,
        out_specs=pl.BlockSpec((TB, 1), lambda i: (i, 0)),
        compiler_params=pltpu.CompilerParams(
            dimension_semantics=("parallel",),
            vmem_limit_bytes=48 * 1024 * 1024),   # above v5e's 16 MiB default
    )(x, *flat)

    # NOTE: for B == 1 torch x.squeeze() would return a 0-d scalar; this matches
    # the B > 1 contract (shape (B,)).
    return jnp.squeeze(out[:B], axis=-1)


# ------------------------- plain-JAX encoder "glue" -------------------------
def protein_pool(protein_seq, params):
    # ProteinEncoder stand-in: embedding lookup -> mean over sequence.
    # (The readout linear + relu is folded into the Pallas head kernel.)
    emb = params["prot_table"][protein_seq]            # (B, L, PROT_EMB)
    return jnp.mean(emb, axis=1)                       # (B, PROT_EMB)


def gnn_pool(x, edge_index, edge_attr, batch, num_graphs, params):
    # GNNEncoder stand-in: one message-passing step + mean pool.
    # (The readout linear is folded into the Pallas head kernel.)
    src, dst = edge_index[0], edge_index[1]
    msg = jax.nn.relu(x[src] @ params["gnn_wmsg"]
                      + edge_attr @ params["gnn_wedge"] + params["gnn_bmsg"])
    agg = jax.ops.segment_sum(msg, dst, num_segments=x.shape[0])
    h = jax.nn.relu(x @ params["gnn_wnode"] + agg + params["gnn_bnode"])
    summed = jax.ops.segment_sum(h, batch, num_segments=num_graphs)
    counts = jax.ops.segment_sum(jnp.ones((x.shape[0], 1), jnp.float32),
                                 batch, num_segments=num_graphs)
    return summed / jnp.maximum(counts, 1.0)           # (B, HIDDEN_DIM)


def affinity_forward(protein_seq, drug_x, edge_index, edge_attr, batch,
                     num_graphs, params):
    p_pool = protein_pool(protein_seq, params)
    d_pool = gnn_pool(drug_x, edge_index, edge_attr, batch, num_graphs, params)
    return head_pallas(p_pool, d_pool, params)


# --------------------------- deterministic params ---------------------------
def init_params():
    key = jax.random.PRNGKey(42)

    def nxt():
        nonlocal key
        key, sub = jax.random.split(key)
        return sub

    def w(shape, scale=0.1):
        return (scale * jax.random.normal(nxt(), shape)).astype(jnp.float32)

    def b2d(n):   # biases stored (1, n) so they are 2-D for the slab packing
        return jnp.zeros((1, n), jnp.float32)

    return {
        # protein encoder
        "prot_table": w((VOCAB, PROT_EMB)),
        "prot_w": w((PROT_EMB, PROTEIN_DIM)), "prot_b": b2d(PROTEIN_DIM),
        # drug GNN encoder
        "gnn_wmsg": w((4, HIDDEN_DIM)), "gnn_wedge": w((3, HIDDEN_DIM)),
        "gnn_bmsg": jnp.zeros((HIDDEN_DIM,), jnp.float32),
        "gnn_wnode": w((4, HIDDEN_DIM)), "gnn_bnode": jnp.zeros((HIDDEN_DIM,), jnp.float32),
        "gnn_wout": w((HIDDEN_DIM, DRUG_DIM)), "gnn_bout": b2d(DRUG_DIM),
        # cross layer
        "wc1": w((CROSS_DIM, HIDDEN_DIM)), "bc1": b2d(HIDDEN_DIM),
        "wc2": w((HIDDEN_DIM, 1)), "bc2": b2d(1),
        # cross attention
        "wq": w((PROTEIN_DIM, ATTENTION_DIM)), "bq": b2d(ATTENTION_DIM),
        "wk": w((DRUG_DIM, ATTENTION_DIM)), "bk": b2d(ATTENTION_DIM),
        "wv": w((DRUG_DIM, ATTENTION_DIM)), "bv": b2d(ATTENTION_DIM),
        # capsule layers (num_capsules fused into one (in, 8*cap) matmul)
        "wpc": w((PROTEIN_DIM, NUM_CAPSULES * CAPSULE_DIM)), "bpc": b2d(NUM_CAPSULES * CAPSULE_DIM),
        "wdc": w((DRUG_DIM, NUM_CAPSULES * CAPSULE_DIM)), "bdc": b2d(NUM_CAPSULES * CAPSULE_DIM),
        # MLP head
        "w1": w((OUTPUT_DIM, FC1_DIM)), "b1": b2d(FC1_DIM),
        "w2": w((FC1_DIM, FC2_DIM)), "b2": b2d(FC2_DIM),
        "w3": w((FC2_DIM, 1)), "b3": b2d(1),
    }


# ----------------------------------- main ------------------------------------
if __name__ == "__main__":
    B, L = 2, 8            # batch of 2 protein sequences, length 8
    N, E = 10, 16          # 10 graph nodes, 16 edges total (2 drug graphs)

    key = jax.random.PRNGKey(0)
    k1, k2, k3, k4 = jax.random.split(key, 4)

    protein_seq = jax.random.randint(k1, (B, L), 0, VOCAB, dtype=jnp.int32)
    drug_x = jax.random.normal(k2, (N, 4), dtype=jnp.float32)
    edge_index = jax.random.randint(k3, (2, E), 0, N, dtype=jnp.int32)
    edge_attr = jax.random.normal(k4, (E, 3), dtype=jnp.float32)
    batch = jnp.array([0] * (N // 2) + [1] * (N - N // 2), dtype=jnp.int32)

    params = init_params()

    fwd = jax.jit(affinity_forward, static_argnums=5)
    out = fwd(protein_seq, drug_x, edge_index, edge_attr, batch, B, params)
    out = jax.block_until_ready(out)
    assert out.shape == (B,), out.shape
    assert bool(jnp.all(jnp.isfinite(out)))
    print("KERNEL_OK")
</pallas_src>

<mosaic_0001>
module attributes {stable_mosaic.version = 11 : i64} {
  func.func @head_kernel(%arg0: i32, %arg1: memref<8x48xbf16, #tpu.memory_space<vmem>>, %arg2: memref<48x64xbf16, #tpu.memory_space<vmem>>, %arg3: memref<32x768xbf16, #tpu.memory_space<vmem>>, %arg4: memref<16x384xbf16, #tpu.memory_space<vmem>>, %arg5: memref<128x256xbf16, #tpu.memory_space<vmem>>, %arg6: memref<8x128xbf16, #tpu.memory_space<vmem>>, %arg7: memref<56x28xbf16, #tpu.memory_space<vmem>>, %arg8: memref<28x1xbf16, #tpu.memory_space<vmem>>, %arg9: memref<1x1408xf32, #tpu.memory_space<vmem>>, %arg10: memref<8x1xf32, #tpu.memory_space<vmem>>) attributes {dimension_semantics = [#tpu.dimension_semantics<parallel>], iteration_bounds = array<i64: 1>, scalar_prefetch = 0 : i64, scratch_operands = 0 : i64, tpu.core_type = #tpu.core_type<tc>, window_params = [{transform_indices = @transform_0, window_bounds = array<i64: 8, 48>}, {pipeline_mode = #tpu.pipeline_mode<synchronous>, transform_indices = @transform_1, window_bounds = array<i64: 48, 64>}, {pipeline_mode = #tpu.pipeline_mode<synchronous>, transform_indices = @transform_2, window_bounds = array<i64: 32, 768>}, {pipeline_mode = #tpu.pipeline_mode<synchronous>, transform_indices = @transform_3, window_bounds = array<i64: 16, 384>}, {pipeline_mode = #tpu.pipeline_mode<synchronous>, transform_indices = @transform_4, window_bounds = array<i64: 128, 256>}, {pipeline_mode = #tpu.pipeline_mode<synchronous>, transform_indices = @transform_5, window_bounds = array<i64: 8, 128>}, {pipeline_mode = #tpu.pipeline_mode<synchronous>, transform_indices = @transform_6, window_bounds = array<i64: 56, 28>}, {pipeline_mode = #tpu.pipeline_mode<synchronous>, transform_indices = @transform_7, window_bounds = array<i64: 28, 1>}, {pipeline_mode = #tpu.pipeline_mode<synchronous>, transform_indices = @transform_8, window_bounds = array<i64: 1, 1408>}, {transform_indices = @transform_9, window_bounds = array<i64: 8, 1>}]} {
    %c0 = arith.constant 0 : index
    %c0_0 = arith.constant 0 : index
    %0 = vector.load %arg1[%c0, %c0_0] : memref<8x48xbf16, #tpu.memory_space<vmem>>, vector<8x48xbf16>
    %c0_1 = arith.constant 0 : index
    %c0_2 = arith.constant 0 : index
    %1 = vector.load %arg2[%c0_1, %c0_2] : memref<48x64xbf16, #tpu.memory_space<vmem>>, vector<48x64xbf16>
    %cst = arith.constant dense<0.000000e+00> : vector<8x64xf32>
    %2 = tpu.matmul %0, %1, %cst {dimension_numbers = #tpu.dot_dimension_numbers<[1], [0], [0], [1], [0, 0, 1, 1], [], []>} : vector<8x48xbf16>, vector<48x64xbf16>, vector<8x64xf32> -> vector<8x64xf32>
    %c0_3 = arith.constant 0 : index
    %c0_4 = arith.constant 0 : index
    %3 = vector.load %arg9[%c0_3, %c0_4] : memref<1x1408xf32, #tpu.memory_space<vmem>>, vector<1x64xf32>
    %4 = vector.broadcast %3 : vector<1x64xf32> to vector<8x64xf32>
    %5 = arith.addf %2, %4 : vector<8x64xf32>
    %6 = vector.extract_strided_slice %5 {offsets = [0, 0], sizes = [8, 32], strides = [1, 1]} : vector<8x64xf32> to vector<8x32xf32>
    %cst_5 = arith.constant 0.000000e+00 : f32
    %7 = vector.broadcast %cst_5 : f32 to vector<8x32xf32>
    %8 = arith.maximumf %6, %7 : vector<8x32xf32>
    %9 = vector.extract_strided_slice %5 {offsets = [0, 32], sizes = [8, 32], strides = [1, 1]} : vector<8x64xf32> to vector<8x32xf32>
    %10 = arith.truncf %8 : vector<8x32xf32> to vector<8x32xbf16>
    %11 = arith.truncf %9 : vector<8x32xf32> to vector<8x32xbf16>
    %12 = arith.mulf %8, %9 : vector<8x32xf32>
    %13 = arith.truncf %12 : vector<8x32xf32> to vector<8x32xbf16>
    %c0_6 = arith.constant 0 : index
    %c0_7 = arith.constant 0 : index
    %14 = vector.load %arg3[%c0_6, %c0_7] : memref<32x768xbf16, #tpu.memory_space<vmem>>, vector<32x232xbf16>
    %cst_8 = arith.constant dense<0.000000e+00> : vector<8x232xf32>
    %15 = tpu.matmul %10, %14, %cst_8 {dimension_numbers = #tpu.dot_dimension_numbers<[1], [0], [0], [1], [0, 0, 1, 1], [], []>} : vector<8x32xbf16>, vector<32x232xbf16>, vector<8x232xf32> -> vector<8x232xf32>
    %c0_9 = arith.constant 0 : index
    %c128 = arith.constant 128 : index
    %16 = vector.load %arg9[%c0_9, %c128] : memref<1x1408xf32, #tpu.memory_space<vmem>>, vector<1x232xf32>
    %17 = vector.broadcast %16 : vector<1x232xf32> to vector<8x232xf32>
    %18 = arith.addf %15, %17 : vector<8x232xf32>
    %c0_10 = arith.constant 0 : index
    %c256 = arith.constant 256 : index
    %19 = vector.load %arg3[%c0_10, %c256] : memref<32x768xbf16, #tpu.memory_space<vmem>>, vector<32x248xbf16>
    %cst_11 = arith.constant dense<0.000000e+00> : vector<8x248xf32>
    %20 = tpu.matmul %11, %19, %cst_11 {dimension_numbers = #tpu.dot_dimension_numbers<[1], [0], [0], [1], [0, 0, 1, 1], [], []>} : vector<8x32xbf16>, vector<32x248xbf16>, vector<8x248xf32> -> vector<8x248xf32>
    %c0_12 = arith.constant 0 : index
    %c384 = arith.constant 384 : index
    %21 = vector.load %arg9[%c0_12, %c384] : memref<1x1408xf32, #tpu.memory_space<vmem>>, vector<1x248xf32>
    %22 = vector.broadcast %21 : vector<1x248xf32> to vector<8x248xf32>
    %23 = arith.addf %20, %22 : vector<8x248xf32>
    %24 = vector.extract_strided_slice %18 {offsets = [0, 144], sizes = [8, 32], strides = [1, 1]} : vector<8x232xf32> to vector<8x32xf32>
    %25 = vector.extract_strided_slice %23 {offsets = [0, 160], sizes = [8, 32], strides = [1, 1]} : vector<8x248xf32> to vector<8x32xf32>
    %26 = arith.addf %24, %25 : vector<8x32xf32>
    %c0_13 = arith.constant 0 : index
    %c512 = arith.constant 512 : index
    %27 = vector.load %arg3[%c0_13, %c512] : memref<32x768xbf16, #tpu.memory_space<vmem>>, vector<32x32xbf16>
    %cst_14 = arith.constant dense<0.000000e+00> : vector<8x32xf32>
    %28 = tpu.matmul %13, %27, %cst_14 {dimension_numbers = #tpu.dot_dimension_numbers<[1], [0], [0], [1], [0, 0, 1, 1], [], []>} : vector<8x32xbf16>, vector<32x32xbf16>, vector<8x32xf32> -> vector<8x32xf32>
    %29 = arith.addf %26, %28 : vector<8x32xf32>
    %c0_15 = arith.constant 0 : index
    %c640 = arith.constant 640 : index
    %30 = vector.load %arg9[%c0_15, %c640] : memref<1x1408xf32, #tpu.memory_space<vmem>>, vector<1x32xf32>
    %31 = vector.broadcast %30 : vector<1x32xf32> to vector<8x32xf32>
    %32 = arith.addf %29, %31 : vector<8x32xf32>
    %cst_16 = arith.constant 0.000000e+00 : f32
    %33 = vector.broadcast %cst_16 : f32 to vector<8x32xf32>
    %34 = arith.maximumf %32, %33 : vector<8x32xf32>
    %35 = arith.truncf %34 : vector<8x32xf32> to vector<8x32xbf16>
    %c0_17 = arith.constant 0 : index
    %c640_18 = arith.constant 640 : index
    %36 = vector.load %arg3[%c0_17, %c640_18] : memref<32x768xbf16, #tpu.memory_space<vmem>>, vector<32x1xbf16>
    %cst_19 = arith.constant dense<0.000000e+00> : vector<8x1xf32>
    %37 = tpu.matmul %35, %36, %cst_19 {dimension_numbers = #tpu.dot_dimension_numbers<[1], [0], [0], [1], [0, 0, 1, 1], [], []>} : vector<8x32xbf16>, vector<32x1xbf16>, vector<8x1xf32> -> vector<8x1xf32>
    %c0_20 = arith.constant 0 : index
    %c768 = arith.constant 768 : index
    %38 = vector.load %arg9[%c0_20, %c768] : memref<1x1408xf32, #tpu.memory_space<vmem>>, vector<1x1xf32>
    %39 = vector.broadcast %38 : vector<1x1xf32> to vector<8x1xf32>
    %40 = arith.addf %37, %39 : vector<8x1xf32>
    %41 = vector.extract_strided_slice %18 {offsets = [0, 128], sizes = [8, 16], strides = [1, 1]} : vector<8x232xf32> to vector<8x16xf32>
    %42 = vector.extract_strided_slice %23 {offsets = [0, 128], sizes = [8, 16], strides = [1, 1]} : vector<8x248xf32> to vector<8x16xf32>
    %43 = vector.extract_strided_slice %23 {offsets = [0, 144], sizes = [8, 16], strides = [1, 1]} : vector<8x248xf32> to vector<8x16xf32>
    %44 = arith.mulf %41, %42 : vector<8x16xf32>
    %cst_21 = arith.constant 2.500000e-01 : f32
    %45 = vector.broadcast %cst_21 : f32 to vector<8x16xf32>
    %46 = arith.mulf %44, %45 : vector<8x16xf32>
    %cst_22 = arith.constant dense<0xFF800000> : vector<8xf32>
    %47 = vector.multi_reduction <maximumf>, %46, %cst_22 [1] : vector<8x16xf32> to vector<8xf32>
    %48 = vector.shape_cast %47 : vector<8xf32> to vector<8x1xf32>
    %49 = vector.broadcast %48 : vector<8x1xf32> to vector<8x16xf32>
    %50 = arith.subf %46, %49 : vector<8x16xf32>
    %51 = math.exp %50 : vector<8x16xf32>
    %cst_23 = arith.constant dense<0.000000e+00> : vector<8xf32>
    %52 = vector.multi_reduction <add>, %51, %cst_23 [1] : vector<8x16xf32> to vector<8xf32>
    %53 = vector.shape_cast %52 : vector<8xf32> to vector<8x1xf32>
    %54 = tpu.reciprocal %53 {approx = true} : vector<8x1xf32> -> vector<8x1xf32>
    %55 = vector.broadcast %54 : vector<8x1xf32> to vector<8x16xf32>
    %56 = arith.mulf %51, %55 : vector<8x16xf32>
    %57 = arith.mulf %56, %43 : vector<8x16xf32>
    %c0_24 = arith.constant 0 : index
    %c0_25 = arith.constant 0 : index
    %58 = vector.load %arg5[%c0_24, %c0_25] : memref<128x256xbf16, #tpu.memory_space<vmem>>, vector<128x8xbf16>
    %c0_26 = arith.constant 0 : index
    %c128_27 = arith.constant 128 : index
    %59 = vector.load %arg5[%c0_26, %c128_27] : memref<128x256xbf16, #tpu.memory_space<vmem>>, vector<128x16xbf16>
    %c0_28 = arith.constant 0 : index
    %c0_29 = arith.constant 0 : index
    %60 = vector.load %arg6[%c0_28, %c0_29] : memref<8x128xbf16, #tpu.memory_space<vmem>>, vector<8x128xbf16>
    %61 = vector.extract_strided_slice %18 {offsets = [0, 0], sizes = [8, 128], strides = [1, 1]} : vector<8x232xf32> to vector<8x128xf32>
    %62 = arith.mulf %61, %61 : vector<8x128xf32>
    %63 = arith.truncf %62 : vector<8x128xf32> to vector<8x128xbf16>
    %cst_30 = arith.constant dense<0.000000e+00> : vector<8x8xf32>
    %64 = tpu.matmul %63, %58, %cst_30 {dimension_numbers = #tpu.dot_dimension_numbers<[1], [0], [0], [1], [0, 0, 1, 1], [], []>} : vector<8x128xbf16>, vector<128x8xbf16>, vector<8x8xf32> -> vector<8x8xf32>
    %cst_31 = arith.constant 9.99999993E-9 : f32
    %65 = vector.broadcast %cst_31 : f32 to vector<8x8xf32>
    %66 = arith.addf %64, %65 : vector<8x8xf32>
    %67 = math.rsqrt %66 : vector<8x8xf32>
    %68 = arith.mulf %64, %67 : vector<8x8xf32>
    %cst_32 = arith.constant 1.000000e+00 : f32
    %69 = vector.broadcast %cst_32 : f32 to vector<8x8xf32>
    %70 = arith.addf %69, %64 : vector<8x8xf32>
    %71 = tpu.reciprocal %70 {approx = true} : vector<8x8xf32> -> vector<8x8xf32>
    %72 = arith.mulf %68, %71 : vector<8x8xf32>
    %73 = arith.truncf %72 : vector<8x8xf32> to vector<8x8xbf16>
    %cst_33 = arith.constant dense<0.000000e+00> : vector<8x128xf32>
    %74 = tpu.matmul %73, %60, %cst_33 {dimension_numbers = #tpu.dot_dimension_numbers<[1], [0], [0], [1], [0, 0, 1, 1], [], []>} : vector<8x8xbf16>, vector<8x128xbf16>, vector<8x128xf32> -> vector<8x128xf32>
    %75 = arith.mulf %61, %74 : vector<8x128xf32>
    %76 = arith.truncf %75 : vector<8x128xf32> to vector<8x128xbf16>
    %cst_34 = arith.constant dense<0.000000e+00> : vector<8x16xf32>
    %77 = tpu.matmul %76, %59, %cst_34 {dimension_numbers = #tpu.dot_dimension_numbers<[1], [0], [0], [1], [0, 0, 1, 1], [], []>} : vector<8x128xbf16>, vector<128x16xbf16>, vector<8x16xf32> -> vector<8x16xf32>
    %cst_35 = arith.constant 1.250000e-01 : f32
    %78 = vector.broadcast %cst_35 : f32 to vector<8x16xf32>
    %79 = arith.mulf %77, %78 : vector<8x16xf32>
    %80 = vector.extract_strided_slice %23 {offsets = [0, 0], sizes = [8, 128], strides = [1, 1]} : vector<8x248xf32> to vector<8x128xf32>
    %81 = arith.mulf %80, %80 : vector<8x128xf32>
    %82 = arith.truncf %81 : vector<8x128xf32> to vector<8x128xbf16>
    %cst_36 = arith.constant dense<0.000000e+00> : vector<8x8xf32>
    %83 = tpu.matmul %82, %58, %cst_36 {dimension_numbers = #tpu.dot_dimension_numbers<[1], [0], [0], [1], [0, 0, 1, 1], [], []>} : vector<8x128xbf16>, vector<128x8xbf16>, vector<8x8xf32> -> vector<8x8xf32>
    %cst_37 = arith.constant 9.99999993E-9 : f32
    %84 = vector.broadcast %cst_37 : f32 to vector<8x8xf32>
    %85 = arith.addf %83, %84 : vector<8x8xf32>
    %86 = math.rsqrt %85 : vector<8x8xf32>
    %87 = arith.mulf %83, %86 : vector<8x8xf32>
    %cst_38 = arith.constant 1.000000e+00 : f32
    %88 = vector.broadcast %cst_38 : f32 to vector<8x8xf32>
    %89 = arith.addf %88, %83 : vector<8x8xf32>
    %90 = tpu.reciprocal %89 {approx = true} : vector<8x8xf32> -> vector<8x8xf32>
    %91 = arith.mulf %87, %90 : vector<8x8xf32>
    %92 = arith.truncf %91 : vector<8x8xf32> to vector<8x8xbf16>
    %cst_39 = arith.constant dense<0.000000e+00> : vector<8x128xf32>
    %93 = tpu.matmul %92, %60, %cst_39 {dimension_numbers = #tpu.dot_dimension_numbers<[1], [0], [0], [1], [0, 0, 1, 1], [], []>} : vector<8x8xbf16>, vector<8x128xbf16>, vector<8x128xf32> -> vector<8x128xf32>
    %94 = arith.mulf %80, %93 : vector<8x128xf32>
    %95 = arith.truncf %94 : vector<8x128xf32> to vector<8x128xbf16>
    %cst_40 = arith.constant dense<0.000000e+00> : vector<8x16xf32>
    %96 = tpu.matmul %95, %59, %cst_40 {dimension_numbers = #tpu.dot_dimension_numbers<[1], [0], [0], [1], [0, 0, 1, 1], [], []>} : vector<8x128xbf16>, vector<128x16xbf16>, vector<8x16xf32> -> vector<8x16xf32>
    %cst_41 = arith.constant 1.250000e-01 : f32
    %97 = vector.broadcast %cst_41 : f32 to vector<8x16xf32>
    %98 = arith.mulf %96, %97 : vector<8x16xf32>
    %99 = vector.extract_strided_slice %18 {offsets = [0, 176], sizes = [8, 56], strides = [1, 1]} : vector<8x232xf32> to vector<8x56xf32>
    %100 = vector.extract_strided_slice %23 {offsets = [0, 192], sizes = [8, 56], strides = [1, 1]} : vector<8x248xf32> to vector<8x56xf32>
    %101 = arith.addf %99, %100 : vector<8x56xf32>
    %c0_42 = arith.constant 0 : index
    %c896 = arith.constant 896 : index
    %102 = vector.load %arg9[%c0_42, %c896] : memref<1x1408xf32, #tpu.memory_space<vmem>>, vector<1x56xf32>
    %103 = vector.broadcast %40 : vector<8x1xf32> to vector<8x56xf32>
    %104 = vector.broadcast %102 : vector<1x56xf32> to vector<8x56xf32>
    %105 = arith.mulf %103, %104 : vector<8x56xf32>
    %106 = arith.addf %101, %105 : vector<8x56xf32>
    %107 = arith.truncf %57 : vector<8x16xf32> to vector<8x16xbf16>
    %c0_43 = arith.constant 0 : index
    %c0_44 = arith.constant 0 : index
    %108 = vector.load %arg4[%c0_43, %c0_44] : memref<16x384xbf16, #tpu.memory_space<vmem>>, vector<16x56xbf16>
    %cst_45 = arith.constant dense<0.000000e+00> : vector<8x56xf32>
    %109 = tpu.matmul %107, %108, %cst_45 {dimension_numbers = #tpu.dot_dimension_numbers<[1], [0], [0], [1], [0, 0, 1, 1], [], []>} : vector<8x16xbf16>, vector<16x56xbf16>, vector<8x56xf32> -> vector<8x56xf32>
    %110 = arith.addf %106, %109 : vector<8x56xf32>
    %111 = arith.truncf %79 : vector<8x16xf32> to vector<8x16xbf16>
    %c0_46 = arith.constant 0 : index
    %c128_47 = arith.constant 128 : index
    %112 = vector.load %arg4[%c0_46, %c128_47] : memref<16x384xbf16, #tpu.memory_space<vmem>>, vector<16x56xbf16>
    %cst_48 = arith.constant dense<0.000000e+00> : vector<8x56xf32>
    %113 = tpu.matmul %111, %112, %cst_48 {dimension_numbers = #tpu.dot_dimension_numbers<[1], [0], [0], [1], [0, 0, 1, 1], [], []>} : vector<8x16xbf16>, vector<16x56xbf16>, vector<8x56xf32> -> vector<8x56xf32>
    %114 = arith.addf %110, %113 : vector<8x56xf32>
    %115 = arith.truncf %98 : vector<8x16xf32> to vector<8x16xbf16>
    %c0_49 = arith.constant 0 : index
    %c256_50 = arith.constant 256 : index
    %116 = vector.load %arg4[%c0_49, %c256_50] : memref<16x384xbf16, #tpu.memory_space<vmem>>, vector<16x56xbf16>
    %cst_51 = arith.constant dense<0.000000e+00> : vector<8x56xf32>
    %117 = tpu.matmul %115, %116, %cst_51 {dimension_numbers = #tpu.dot_dimension_numbers<[1], [0], [0], [1], [0, 0, 1, 1], [], []>} : vector<8x16xbf16>, vector<16x56xbf16>, vector<8x56xf32> -> vector<8x56xf32>
    %118 = arith.addf %114, %117 : vector<8x56xf32>
    %c0_52 = arith.constant 0 : index
    %c1024 = arith.constant 1024 : index
    %119 = vector.load %arg9[%c0_52, %c1024] : memref<1x1408xf32, #tpu.memory_space<vmem>>, vector<1x56xf32>
    %120 = vector.broadcast %119 : vector<1x56xf32> to vector<8x56xf32>
    %121 = arith.addf %118, %120 : vector<8x56xf32>
    %cst_53 = arith.constant 0.000000e+00 : f32
    %122 = vector.broadcast %cst_53 : f32 to vector<8x56xf32>
    %123 = arith.maximumf %121, %122 : vector<8x56xf32>
    %124 = arith.truncf %123 : vector<8x56xf32> to vector<8x56xbf16>
    %c0_54 = arith.constant 0 : index
    %c0_55 = arith.constant 0 : index
    %125 = vector.load %arg7[%c0_54, %c0_55] : memref<56x28xbf16, #tpu.memory_space<vmem>>, vector<56x28xbf16>
    %cst_56 = arith.constant dense<0.000000e+00> : vector<8x28xf32>
    %126 = tpu.matmul %124, %125, %cst_56 {dimension_numbers = #tpu.dot_dimension_numbers<[1], [0], [0], [1], [0, 0, 1, 1], [], []>} : vector<8x56xbf16>, vector<56x28xbf16>, vector<8x28xf32> -> vector<8x28xf32>
    %c0_57 = arith.constant 0 : index
    %c1152 = arith.constant 1152 : index
    %127 = vector.load %arg9[%c0_57, %c1152] : memref<1x1408xf32, #tpu.memory_space<vmem>>, vector<1x28xf32>
    %128 = vector.broadcast %127 : vector<1x28xf32> to vector<8x28xf32>
    %129 = arith.addf %126, %128 : vector<8x28xf32>
    %cst_58 = arith.constant 0.000000e+00 : f32
    %130 = vector.broadcast %cst_58 : f32 to vector<8x28xf32>
    %131 = arith.maximumf %129, %130 : vector<8x28xf32>
    %132 = arith.truncf %131 : vector<8x28xf32> to vector<8x28xbf16>
    %c0_59 = arith.constant 0 : index
    %c0_60 = arith.constant 0 : index
    %133 = vector.load %arg8[%c0_59, %c0_60] : memref<28x1xbf16, #tpu.memory_space<vmem>>, vector<28x1xbf16>
    %cst_61 = arith.constant dense<0.000000e+00> : vector<8x1xf32>
    %134 = tpu.matmul %132, %133, %cst_61 {dimension_numbers = #tpu.dot_dimension_numbers<[1], [0], [0], [1], [0, 0, 1, 1], [], []>} : vector<8x28xbf16>, vector<28x1xbf16>, vector<8x1xf32> -> vector<8x1xf32>
    %c0_62 = arith.constant 0 : index
    %c1280 = arith.constant 1280 : index
    %135 = vector.load %arg9[%c0_62, %c1280] : memref<1x1408xf32, #tpu.memory_space<vmem>>, vector<1x1xf32>
    %136 = vector.broadcast %135 : vector<1x1xf32> to vector<8x1xf32>
    %137 = arith.addf %134, %136 : vector<8x1xf32>
    %c0_63 = arith.constant 0 : index
    %c0_64 = arith.constant 0 : index
    %138 = vector.load %arg10[%c0_63, %c0_64] : memref<8x1xf32, #tpu.memory_space<vmem>>, vector<8x1xf32>
    tpu.vector_store %arg10[%c0_63, %c0_64], %137 {strides = array<i32>} : memref<8x1xf32, #tpu.memory_space<vmem>>, vector<8x1xf32>,
    return
  }
  func.func @transform_0(%arg0: i32) -> (i32, i32) {
    %c0_i32 = arith.constant 0 : i32
    %c0_i32_0 = arith.constant 0 : i32
    return %arg0, %c0_i32 : i32, i32
  }
  func.func @transform_1(%arg0: i32) -> (i32, i32) {
    %c0_i32 = arith.constant 0 : i32
    %c0_i32_0 = arith.constant 0 : i32
    %c0_i32_1 = arith.constant 0 : i32
    return %c0_i32, %c0_i32_0 : i32, i32
  }
  func.func @transform_2(%arg0: i32) -> (i32, i32) {
    %c0_i32 = arith.constant 0 : i32
    %c0_i32_0 = arith.constant 0 : i32
    %c0_i32_1 = arith.constant 0 : i32
    return %c0_i32, %c0_i32_0 : i32, i32
  }
  func.func @transform_3(%arg0: i32) -> (i32, i32) {
    %c0_i32 = arith.constant 0 : i32
    %c0_i32_0 = arith.constant 0 : i32
    %c0_i32_1 = arith.constant 0 : i32
    return %c0_i32, %c0_i32_0 : i32, i32
  }
  func.func @transform_4(%arg0: i32) -> (i32, i32) {
    %c0_i32 = arith.constant 0 : i32
    %c0_i32_0 = arith.constant 0 : i32
    %c0_i32_1 = arith.constant 0 : i32
    return %c0_i32, %c0_i32_0 : i32, i32
  }
  func.func @transform_5(%arg0: i32) -> (i32, i32) {
    %c0_i32 = arith.constant 0 : i32
    %c0_i32_0 = arith.constant 0 : i32
    %c0_i32_1 = arith.constant 0 : i32
    return %c0_i32, %c0_i32_0 : i32, i32
  }
  func.func @transform_6(%arg0: i32) -> (i32, i32) {
    %c0_i32 = arith.constant 0 : i32
    %c0_i32_0 = arith.constant 0 : i32
    %c0_i32_1 = arith.constant 0 : i32
    return %c0_i32, %c0_i32_0 : i32, i32
  }
  func.func @transform_7(%arg0: i32) -> (i32, i32) {
    %c0_i32 = arith.constant 0 : i32
    %c0_i32_0 = arith.constant 0 : i32
    %c0_i32_1 = arith.constant 0 : i32
    return %c0_i32, %c0_i32_0 : i32, i32
  }
  func.func @transform_8(%arg0: i32) -> (i32, i32) {
    %c0_i32 = arith.constant 0 : i32
    %c0_i32_0 = arith.constant 0 : i32
    %c0_i32_1 = arith.constant 0 : i32
    return %c0_i32, %c0_i32_0 : i32, i32
  }
  func.func @transform_9(%arg0: i32) -> (i32, i32) {
    %c0_i32 = arith.constant 0 : i32
    %c0_i32_0 = arith.constant 0 : i32
    return %arg0, %c0_i32 : i32, i32
  }
}

</mosaic_0001>

<llo_original>
// kernel: affinity_forward.1
$region0: #{affinity_forward.1}
  #allocation0 [shape = 'u32[]', space=smem, size = 0x4, offset = 0x4, fixed_abs, tag = 'smem constant byte address 0x4 - core index']
  #allocation1 [shape = 'u32[72,128]{1,0:T(1,128)}', space=vmem, size = 0x9000, scoped, tag = 'internal scratch']
  %s0 = inlined_call_operand.vmem [shape: bf16[8,48], index: 0, kind: input, shape index: {}]
  %s1 = inlined_call_operand.vmem [shape: bf16[48,64], index: 1, kind: input, shape index: {}]
  %s2 = inlined_call_operand.vmem [shape: bf16[32,768], index: 2, kind: input, shape index: {}]
  %s3 = inlined_call_operand.vmem [shape: bf16[16,384], index: 3, kind: input, shape index: {}]
  %s4 = inlined_call_operand.vmem [shape: bf16[128,256], index: 4, kind: input, shape index: {}]
  %s5 = inlined_call_operand.vmem [shape: bf16[8,128], index: 5, kind: input, shape index: {}]
  %s6 = inlined_call_operand.vmem [shape: bf16[56,28], index: 6, kind: input, shape index: {}]
  %s7 = inlined_call_operand.vmem [shape: bf16[28,1], index: 7, kind: input, shape index: {}]
  %s8 = inlined_call_operand.vmem [shape: f32[1,1408], index: 8, kind: input, shape index: {}]
  %s9 = inlined_call_operand.vmem [shape: f32[8,1], index: 9, kind: output, shape index: {}]
  %s10 = sld [smem:[#allocation0]]
  $region46: #{affinity_forward.1} parent=0
    _
  %s12 = ssub.s32 1, %s10
  %s13 = scalar_select 0, %s12, %s10
  // Predicated region
  $region2: #{affinity_forward.1} parent=0 // pred_check
    _
  $region3: #{affinity_forward.1} parent=0 // pred_check_branch
    %15 = sbr.rel (0) target = $region5
  $region4: #{affinity_forward.1} parent=0 // pred_region
    _
  $region5: #{affinity_forward.1} parent=0 // pred_fallthru
    _
  // Predicated region
  $region6: #{affinity_forward.1} parent=0 // pred_check
    _
  $region7: #{affinity_forward.1} parent=0 // pred_check_branch
    %17 = sbr.rel (0) target = $region9
  $region8: #{affinity_forward.1} parent=0 // pred_region
    _
  $region9: #{affinity_forward.1} parent=0 // pred_fallthru
    _
  // Predicated region
  $region10: #{affinity_forward.1} parent=0 // pred_check
    _
  $region11: #{affinity_forward.1} parent=0 // pred_check_branch
    %19 = sbr.rel (0) target = $region13
  $region12: #{affinity_forward.1} parent=0 // pred_region
    _
  $region13: #{affinity_forward.1} parent=0 // pred_fallthru
    _
  // Predicated region
  $region14: #{affinity_forward.1} parent=0 // pred_check
    _
  $region15: #{affinity_forward.1} parent=0 // pred_check_branch
    %21 = sbr.rel (0) target = $region17
  $region16: #{affinity_forward.1} parent=0 // pred_region
    _
  $region17: #{affinity_forward.1} parent=0 // pred_fallthru
    _
  // Predicated region
  $region18: #{affinity_forward.1} parent=0 // pred_check
    _
  $region19: #{affinity_forward.1} parent=0 // pred_check_branch
    %23 = sbr.rel (0) target = $region21
  $region20: #{affinity_forward.1} parent=0 // pred_region
    _
  $region21: #{affinity_forward.1} parent=0 // pred_fallthru
    _
  // Predicated region
  $region22: #{affinity_forward.1} parent=0 // pred_check
    _
  $region23: #{affinity_forward.1} parent=0 // pred_check_branch
    %25 = sbr.rel (0) target = $region25
  $region24: #{affinity_forward.1} parent=0 // pred_region
    _
  $region25: #{affinity_forward.1} parent=0 // pred_fallthru
    _
  // Predicated region
  $region26: #{affinity_forward.1} parent=0 // pred_check
    _
  $region27: #{affinity_forward.1} parent=0 // pred_check_branch
    %27 = sbr.rel (0) target = $region29
  $region28: #{affinity_forward.1} parent=0 // pred_region
    _
  $region29: #{affinity_forward.1} parent=0 // pred_fallthru
    _
  // Predicated region
  $region30: #{affinity_forward.1} parent=0 // pred_check
    _
  $region31: #{affinity_forward.1} parent=0 // pred_check_branch
    %29 = sbr.rel (0) target = $region33
  $region32: #{affinity_forward.1} parent=0 // pred_region
    _
  $region33: #{affinity_forward.1} parent=0 // pred_fallthru
    _
  // Predicated region
  $region34: #{affinity_forward.1} parent=0 // pred_check
    _
  $region35: #{affinity_forward.1} parent=0 // pred_check_branch
    %31 = sbr.rel (0) target = $region37
  $region36: #{affinity_forward.1} parent=0 // pred_region
    _
  $region37: #{affinity_forward.1} parent=0 // pred_fallthru
    _
  %v33 = vld [vmem:[%s0] sm:$0xf]
  %v34 = vld [vmem:[%s1] sm:$0xf]
  %v35 = vld [vmem:[%s1 + $0x4] sm:$0xf]
  %v36 = vld [vmem:[%s1 + $0x8] sm:$0xf]
  %v37 = vld [vmem:[%s1 + $0xc] sm:$0xf]
  %v38 = vld [vmem:[%s1 + $0x10] sm:$0xf]
  %v39 = vld [vmem:[%s1 + $0x14] sm:$0xf]
  %v40 = vld [vmem:[%s8] sm:$0x1]
  %v42 = vperm.slane %v40, 0
  %v50 = vunpack.c.l.b16 %v34
  %v51 = vunpack.c.l.b16 %v35
  %v52 = vunpack.c.l.b16 %v36
  %v53 = vunpack.c.l.b16 %v37
  %v54 = vunpack.c.l.b16 %v38
  %v55 = vunpack.c.l.b16 %v39
  %v56 = vpack.c.b16 %v51, %v50
  %v57 = vpack.c.b16 %v53, %v52
  %v58 = vpack.c.b16 %v55, %v54
  %vm62 = vcmask 392192
  %v64 = vsel %vm62, %v33, 0
  %66 = vmatpush.bf16.msra.mxu0 0
  %67 = vmatpush.bf16.msra.mxu0 0
  %68 = vmatpush.bf16.msra.mxu0 0
  %69 = vmatpush.bf16.msra.mxu0 0
  %70 = vmatpush.bf16.msra.mxu0 0
  %71 = vmatpush.bf16.msra.mxu0 %v58
  %72 = vmatpush.bf16.msra.mxu0 %v57
  %73 = vmatpush.bf16.msra.mxu0 %v56
  %74 = vmatmul.bf16.gmra.mxu0 %v64
  %v75 = vpop.f32.mrf.mxu0
  %v76 = vadd.f32 %v42, %v75
  %v77 = vpop.f32.mrf.mxu0
  %78 = vdwg.mxu0
  %v79 = vmax.f32 %v76, 0.0
  %v80 = vpack.c.bf16 %v79, %v79
  %v81 = vpack.c.bf16 %v76, %v76
  %83 = vrot.lane.b32.xlu0 %v76, 96
  %v84 = vpop.permute.xlu0 %83
  %v86 = vmul.f32 %v79, %v84
  %v87 = vpack.c.bf16 %v86, %v86
  %v88 = vld [vmem:[%s2] sm:$0xff]
  %v89 = vld [vmem:[%s2 + $0x18] sm:$0xff]
  %v90 = vld [vmem:[%s2 + $0x30] sm:$0xff]
  %v91 = vld [vmem:[%s2 + $0x48] sm:$0xff]
  %v92 = vld [vmem:[%s8 + $0x1] sm:$0x3]
  %v94 = vperm.slane %v92, 0
  %v95 = vperm.slane %v92, 1
  %v102 = vunpack.c.l.b16 %v88
  %v103 = vunpack.c.h.b16 %v88
  %v104 = vunpack.c.l.b16 %v89
  %v105 = vunpack.c.h.b16 %v89
  %v106 = vunpack.c.l.b16 %v90
  %v107 = vunpack.c.h.b16 %v90
  %v108 = vunpack.c.l.b16 %v91
  %v109 = vunpack.c.h.b16 %v91
  %v110 = vpack.c.b16 %v104, %v102
  %v111 = vpack.c.b16 %v105, %v103
  %v112 = vpack.c.b16 %v108, %v106
  %v113 = vpack.c.b16 %v109, %v107
  %vm118 = vcmask 261120
  %v120 = vsel %vm118, %v80, 0
  %122 = vmatpush.bf16.msra.mxu0 0
  %123 = vmatpush.bf16.msra.mxu0 0
  %124 = vmatpush.bf16.msra.mxu0 0
  %125 = vmatpush.bf16.msra.mxu0 0
  %126 = vmatpush.bf16.msra.mxu0 0
  %127 = vmatpush.bf16.msra.mxu0 0
  %128 = vmatpush.bf16.msra.mxu0 %v112
  %129 = vmatpush.bf16.msra.mxu0 %v110
  %130 = vmatmul.bf16.gmra.mxu0 %v120
  %v131 = vpop.f32.mrf.mxu0
  %v132 = vadd.f32 %v94, %v131
  %v133 = vpop.f32.mrf.mxu0
  %134 = vdwg.mxu0
  %135 = vmatpush.bf16.msra.mxu0 0
  %136 = vmatpush.bf16.msra.mxu0 0
  %137 = vmatpush.bf16.msra.mxu0 0
  %138 = vmatpush.bf16.msra.mxu0 0
  %139 = vmatpush.bf16.msra.mxu0 0
  %140 = vmatpush.bf16.msra.mxu0 0
  %141 = vmatpush.bf16.msra.mxu0 %v113
  %142 = vmatpush.bf16.msra.mxu0 %v111
  %143 = vmatmul.bf16.gmra.mxu0 %v120
  %v144 = vpop.f32.mrf.mxu0
  %v145 = vadd.f32 %v95, %v144
  %v146 = vpop.f32.mrf.mxu0
  %147 = vdwg.mxu0
  %v148 = vld [vmem:[%s2 + $0x8] sm:$0xff]
  %v149 = vld [vmem:[%s2 + $0x20] sm:$0xff]
  %v150 = vld [vmem:[%s2 + $0x38] sm:$0xff]
  %v151 = vld [vmem:[%s2 + $0x50] sm:$0xff]
  %v152 = vld [vmem:[%s8 + $0x3] sm:$0x3]
  %v154 = vperm.slane %v152, 0
  %v155 = vperm.slane %v152, 1
  %159 = vrot.lane.b32.xlu0 %v81, 96
  %v160 = vpop.permute.xlu0 %159
  %v165 = vunpack.c.l.b16 %v148
  %v166 = vunpack.c.h.b16 %v148
  %v167 = vunpack.c.l.b16 %v149
  %v168 = vunpack.c.h.b16 %v149
  %v169 = vunpack.c.l.b16 %v150
  %v170 = vunpack.c.h.b16 %v150
  %v171 = vunpack.c.l.b16 %v151
  %v172 = vunpack.c.h.b16 %v151
  %v173 = vpack.c.b16 %v167, %v165
  %v174 = vpack.c.b16 %v168, %v166
  %v175 = vpack.c.b16 %v171, %v169
  %v176 = vpack.c.b16 %v172, %v170
  %v182 = vsel %vm118, %v160, 0
  %184 = vmatpush.bf16.msra.mxu0 0
  %185 = vmatpush.bf16.msra.mxu0 0
  %186 = vmatpush.bf16.msra.mxu0 0
  %187 = vmatpush.bf16.msra.mxu0 0
  %188 = vmatpush.bf16.msra.mxu0 0
  %189 = vmatpush.bf16.msra.mxu0 0
  %190 = vmatpush.bf16.msra.mxu0 %v175
  %191 = vmatpush.bf16.msra.mxu0 %v173
  %192 = vmatmul.bf16.gmra.mxu0 %v182
  %v193 = vpop.f32.mrf.mxu0
  %v194 = vadd.f32 %v154, %v193
  %v195 = vpop.f32.mrf.mxu0
  %196 = vdwg.mxu0
  %197 = vmatpush.bf16.msra.mxu0 0
  %198 = vmatpush.bf16.msra.mxu0 0
  %199 = vmatpush.bf16.msra.mxu0 0
  %200 = vmatpush.bf16.msra.mxu0 0
  %201 = vmatpush.bf16.msra.mxu0 0
  %202 = vmatpush.bf16.msra.mxu0 0
  %203 = vmatpush.bf16.msra.mxu0 %v176
  %204 = vmatpush.bf16.msra.mxu0 %v174
  %205 = vmatmul.bf16.gmra.mxu0 %v182
  %v206 = vpop.f32.mrf.mxu0
  %v207 = vadd.f32 %v155, %v206
  %v208 = vpop.f32.mrf.mxu0
  %209 = vdwg.mxu0
  %211 = vrot.lane.b32.xlu0 %v207, 112
  %v212 = vpop.permute.xlu0 %211
  %v214 = vadd.f32 %v145, %v212
  %v215 = vld [vmem:[%s2 + $0x10] sm:$0xf]
  %v216 = vld [vmem:[%s2 + $0x28] sm:$0xf]
  %v217 = vld [vmem:[%s2 + $0x40] sm:$0xf]
  %v218 = vld [vmem:[%s2 + $0x58] sm:$0xf]
  %v223 = vunpack.c.l.b16 %v215
  %v224 = vunpack.c.l.b16 %v216
  %v225 = vunpack.c.l.b16 %v217
  %v226 = vunpack.c.l.b16 %v218
  %v227 = vpack.c.b16 %v224, %v223
  %v228 = vpack.c.b16 %v226, %v225
  %v232 = vsel %vm118, %v87, 0
  %234 = vmatpush.bf16.msra.mxu0 0
  %235 = vmatpush.bf16.msra.mxu0 0
  %236 = vmatpush.bf16.msra.mxu0 0
  %237 = vmatpush.bf16.msra.mxu0 0
  %238 = vmatpush.bf16.msra.mxu0 0
  %239 = vmatpush.bf16.msra.mxu0 0
  %240 = vmatpush.bf16.msra.mxu0 %v228
  %241 = vmatpush.bf16.msra.mxu0 %v227
  %242 = vmatmul.bf16.gmra.mxu0 %v232
  %v243 = vpop.f32.mrf.mxu0
  %v244 = vadd.f32 0.0, %v243
  %v245 = vpop.f32.mrf.mxu0
  %246 = vdwg.mxu0
  %248 = vrot.lane.b32.xlu0 %v244, 16
  %v249 = vpop.permute.xlu0 %248
  %v251 = vadd.f32 %v214, %v249
  %v252 = vld [vmem:[%s8 + $0x5] sm:$0x1]
  %v254 = vperm.slane %v252, 0
  %255 = vrot.lane.b32.xlu0 %v254, 16
  %v256 = vpop.permute.xlu0 %255
  %v258 = vadd.f32 %v251, %v256
  %v259 = vmax.f32 %v258, 0.0
  %v260 = vpack.c.bf16 %v259, %v259
  %v261 = vld [vmem:[%s2 + $0x14] sm:$0xf]
  %v262 = vld [vmem:[%s2 + $0x2c] sm:$0xf]
  %v263 = vld [vmem:[%s2 + $0x44] sm:$0xf]
  %v264 = vld [vmem:[%s2 + $0x5c] sm:$0xf]
  %v265 = vld [vmem:[%s8 + $0x6] sm:$0x1]
  %v267 = vperm.slane %v265, 0
  %270 = vrot.lane.b32.xlu0 %v260, 112
  %v271 = vpop.permute.xlu0 %270
  %v276 = vunpack.c.l.b16 %v261
  %v277 = vunpack.c.l.b16 %v262
  %v278 = vunpack.c.l.b16 %v263
  %v279 = vunpack.c.l.b16 %v264
  %v280 = vpack.c.b16 %v277, %v276
  %v281 = vpack.c.b16 %v279, %v278
  %v285 = vsel %vm118, %v271, 0
  %287 = vmatpush.bf16.msra.mxu0 0
  %288 = vmatpush.bf16.msra.mxu0 0
  %289 = vmatpush.bf16.msra.mxu0 0
  %290 = vmatpush.bf16.msra.mxu0 0
  %291 = vmatpush.bf16.msra.mxu0 0
  %292 = vmatpush.bf16.msra.mxu0 0
  %293 = vmatpush.bf16.msra.mxu0 %v281
  %294 = vmatpush.bf16.msra.mxu0 %v280
  %295 = vmatmul.bf16.gmra.mxu0 %v285
  %v296 = vpop.f32.mrf.mxu0
  %v297 = vadd.f32 %v267, %v296
  %v298 = vpop.f32.mrf.mxu0
  %299 = vdwg.mxu0
  %v300 = vmul.f32 %v145, %v207
  %v301 = vmul.f32 %v300, 0.25
  %vm302 = vcmask 130048
  %v303 = vsel %vm302, %v301, -inf
  %304 = vmax.xlane.f32.xlu0 %v303
  %v305 = vpop.xlane.xlu0 %304
  %v306 = vsub.f32 %v301, %v305
  %v307 = vmul.f32 %v306, 1.442695
  %v308 = vpow.pop %v307
  %v309 = vsel %vm302, %v308, 0.0
  %310 = vadd.xlane.f32.xlu0 %v309
  %v311 = vpop.xlane.xlu0 %310
  %v312 = vrcp.pop %v311
  %v313 = vmul.f32 %v308, %v312
  %v314 = vmul.f32 %v313, %v212
  %v315 = vld [vmem:[%s4] sm:$0xf]
  %v316 = vld [vmem:[%s4 + $0x8] sm:$0xf]
  %v317 = vld [vmem:[%s4 + $0x10] sm:$0xf]
  %v318 = vld [vmem:[%s4 + $0x18] sm:$0xf]
  %v319 = vld [vmem:[%s4 + $0x20] sm:$0xf]
  %v320 = vld [vmem:[%s4 + $0x28] sm:$0xf]
  %v321 = vld [vmem:[%s4 + $0x30] sm:$0xf]
  %v322 = vld [vmem:[%s4 + $0x38] sm:$0xf]
  %v323 = vld [vmem:[%s4 + $0x40] sm:$0xf]
  %v324 = vld [vmem:[%s4 + $0x48] sm:$0xf]
  %v325 = vld [vmem:[%s4 + $0x50] sm:$0xf]
  %v326 = vld [vmem:[%s4 + $0x58] sm:$0xf]
  %v327 = vld [vmem:[%s4 + $0x60] sm:$0xf]
  %v328 = vld [vmem:[%s4 + $0x68] sm:$0xf]
  %v329 = vld [vmem:[%s4 + $0x70] sm:$0xf]
  %v330 = vld [vmem:[%s4 + $0x78] sm:$0xf]
  %v331 = vld [vmem:[%s4 + $0x4] sm:$0xf]
  %v332 = vld [vmem:[%s4 + $0xc] sm:$0xf]
  %v333 = vld [vmem:[%s4 + $0x14] sm:$0xf]
  %v334 = vld [vmem:[%s4 + $0x1c] sm:$0xf]
  %v335 = vld [vmem:[%s4 + $0x24] sm:$0xf]
  %v336 = vld [vmem:[%s4 + $0x2c] sm:$0xf]
  %v337 = vld [vmem:[%s4 + $0x34] sm:$0xf]
  %v338 = vld [vmem:[%s4 + $0x3c] sm:$0xf]
  %v339 = vld [vmem:[%s4 + $0x44] sm:$0xf]
  %v340 = vld [vmem:[%s4 + $0x4c] sm:$0xf]
  %v341 = vld [vmem:[%s4 + $0x54] sm:$0xf]
  %v342 = vld [vmem:[%s4 + $0x5c] sm:$0xf]
  %v343 = vld [vmem:[%s4 + $0x64] sm:$0xf]
  %v344 = vld [vmem:[%s4 + $0x6c] sm:$0xf]
  %v345 = vld [vmem:[%s4 + $0x74] sm:$0xf]
  %v346 = vld [vmem:[%s4 + $0x7c] sm:$0xf]
  %v347 = vld [vmem:[%s5] sm:$0xf]
  %v348 = vmul.f32 %v132, %v132
  %v349 = vpack.c.bf16 %v348, %v348
  %v366 = vunpack.c.l.b16 %v315
  %v367 = vunpack.c.l.b16 %v316
  %v368 = vunpack.c.l.b16 %v317
  %v369 = vunpack.c.l.b16 %v318
  %v370 = vunpack.c.l.b16 %v319
  %v371 = vunpack.c.l.b16 %v320
  %v372 = vunpack.c.l.b16 %v321
  %v373 = vunpack.c.l.b16 %v322
  %v374 = vunpack.c.l.b16 %v323
  %v375 = vunpack.c.l.b16 %v324
  %v376 = vunpack.c.l.b16 %v325
  %v377 = vunpack.c.l.b16 %v326
  %v378 = vunpack.c.l.b16 %v327
  %v379 = vunpack.c.l.b16 %v328
  %v380 = vunpack.c.l.b16 %v329
  %v381 = vunpack.c.l.b16 %v330
  %v382 = vpack.c.b16 %v367, %v366
  %v383 = vpack.c.b16 %v369, %v368
  %v384 = vpack.c.b16 %v371, %v370
  %v385 = vpack.c.b16 %v373, %v372
  %v386 = vpack.c.b16 %v375, %v374
  %v387 = vpack.c.b16 %v377, %v376
  %v388 = vpack.c.b16 %v379, %v378
  %v389 = vpack.c.b16 %v381, %v380
  %398 = vmatpush.bf16.msra.mxu0 %v389
  %399 = vmatpush.bf16.msra.mxu0 %v388
  %400 = vmatpush.bf16.msra.mxu0 %v387
  %401 = vmatpush.bf16.msra.mxu0 %v386
  %402 = vmatpush.bf16.msra.mxu0 %v385
  %403 = vmatpush.bf16.msra.mxu0 %v384
  %404 = vmatpush.bf16.msra.mxu0 %v383
  %405 = vmatpush.bf16.msra.mxu0 %v382
  %406 = vmatmul.bf16.gmra.mxu0 %v349
  %v407 = vpop.f32.mrf.mxu0
  %v408 = vadd.f32 0.0, %v407
  %v409 = vpop.f32.mrf.mxu0
  %410 = vdwg.mxu0
  %v411 = vadd.f32 %v408, 1e-08
  %v412 = vrsqrt.pop %v411
  %v413 = vmul.f32 %v412, %v411
  %v414 = vmul.f32 %v413, %v412
  %v415 = vmul.f32 0.5, %v414
  %v416 = vsub.f32 1.5, %v415
  %v417 = vmul.f32 %v412, %v416
  %vm418 = vweird.f32 %v411
  %vm419 = vweird.f32 %v412
  %vm420 = vmor %vm418, %vm419
  %v421 = vsel %vm420, %v412, %v417
  %v422 = vmul.f32 %v408, %v421
  %v423 = vadd.f32 %v408, 1.0
  %v424 = vrcp.pop %v423
  %v425 = vmul.f32 %v422, %v424
  %v426 = vpack.c.bf16 %v425, %v425
  %vm427 = vcmask 64512
  %v429 = vsel %vm427, %v426, 0
  %vm431 = vcmask 1043456
  %v433 = vsel %vm431, %v347, 0
  %435 = vmatpush.bf16.msra.mxu0 0
  %436 = vmatpush.bf16.msra.mxu0 0
  %437 = vmatpush.bf16.msra.mxu0 0
  %438 = vmatpush.bf16.msra.mxu0 0
  %439 = vmatpush.bf16.msra.mxu0 0
  %440 = vmatpush.bf16.msra.mxu0 0
  %441 = vmatpush.bf16.msra.mxu0 0
  %442 = vmatpush.bf16.msra.mxu0 %v433
  %443 = vmatmul.bf16.gmra.mxu0 %v429
  %v444 = vpop.f32.mrf.mxu0
  %v445 = vadd.f32 0.0, %v444
  %v446 = vpop.f32.mrf.mxu0
  %447 = vdwg.mxu0
  %v448 = vmul.f32 %v132, %v445
  %v449 = vpack.c.bf16 %v448, %v448
  %v466 = vunpack.c.l.b16 %v331
  %v467 = vunpack.c.l.b16 %v332
  %v468 = vunpack.c.l.b16 %v333
  %v469 = vunpack.c.l.b16 %v334
  %v470 = vunpack.c.l.b16 %v335
  %v471 = vunpack.c.l.b16 %v336
  %v472 = vunpack.c.l.b16 %v337
  %v473 = vunpack.c.l.b16 %v338
  %v474 = vunpack.c.l.b16 %v339
  %v475 = vunpack.c.l.b16 %v340
  %v476 = vunpack.c.l.b16 %v341
  %v477 = vunpack.c.l.b16 %v342
  %v478 = vunpack.c.l.b16 %v343
  %v479 = vunpack.c.l.b16 %v344
  %v480 = vunpack.c.l.b16 %v345
  %v481 = vunpack.c.l.b16 %v346
  %v482 = vpack.c.b16 %v467, %v466
  %v483 = vpack.c.b16 %v469, %v468
  %v484 = vpack.c.b16 %v471, %v470
  %v485 = vpack.c.b16 %v473, %v472
  %v486 = vpack.c.b16 %v475, %v474
  %v487 = vpack.c.b16 %v477, %v476
  %v488 = vpack.c.b16 %v479, %v478
  %v489 = vpack.c.b16 %v481, %v480
  %498 = vmatpush.bf16.msra.mxu0 %v489
  %499 = vmatpush.bf16.msra.mxu0 %v488
  %500 = vmatpush.bf16.msra.mxu0 %v487
  %501 = vmatpush.bf16.msra.mxu0 %v486
  %502 = vmatpush.bf16.msra.mxu0 %v485
  %503 = vmatpush.bf16.msra.mxu0 %v484
  %504 = vmatpush.bf16.msra.mxu0 %v483
  %505 = vmatpush.bf16.msra.mxu0 %v482
  %506 = vmatmul.bf16.gmra.mxu0 %v449
  %v507 = vpop.f32.mrf.mxu0
  %v508 = vadd.f32 0.0, %v507
  %v509 = vpop.f32.mrf.mxu0
  %510 = vdwg.mxu0
  %v511 = vmul.f32 %v508, 0.125
  %v512 = vmul.f32 %v194, %v194
  %v513 = vpack.c.bf16 %v512, %v512
  %514 = vmatpush.bf16.msra.mxu0 %v389
  %515 = vmatpush.bf16.msra.mxu0 %v388
  %516 = vmatpush.bf16.msra.mxu0 %v387
  %517 = vmatpush.bf16.msra.mxu0 %v386
  %518 = vmatpush.bf16.msra.mxu0 %v385
  %519 = vmatpush.bf16.msra.mxu0 %v384
  %520 = vmatpush.bf16.msra.mxu0 %v383
  %521 = vmatpush.bf16.msra.mxu0 %v382
  %522 = vmatmul.bf16.gmra.mxu0 %v513
  %v523 = vpop.f32.mrf.mxu0
  %v524 = vadd.f32 0.0, %v523
  %v525 = vpop.f32.mrf.mxu0
  %526 = vdwg.mxu0
  %v527 = vadd.f32 %v524, 1e-08
  %v528 = vrsqrt.pop %v527
  %v529 = vmul.f32 %v528, %v527
  %v530 = vmul.f32 %v529, %v528
  %v531 = vmul.f32 0.5, %v530
  %v532 = vsub.f32 1.5, %v531
  %v533 = vmul.f32 %v528, %v532
  %vm534 = vweird.f32 %v527
  %vm535 = vweird.f32 %v528
  %vm536 = vmor %vm534, %vm535
  %v537 = vsel %vm536, %v528, %v533
  %v538 = vmul.f32 %v524, %v537
  %v539 = vadd.f32 %v524, 1.0
  %v540 = vrcp.pop %v539
  %v541 = vmul.f32 %v538, %v540
  %v542 = vpack.c.bf16 %v541, %v541
  %v544 = vsel %vm427, %v542, 0
  %546 = vmatpush.bf16.msra.mxu0 0
  %547 = vmatpush.bf16.msra.mxu0 0
  %548 = vmatpush.bf16.msra.mxu0 0
  %549 = vmatpush.bf16.msra.mxu0 0
  %550 = vmatpush.bf16.msra.mxu0 0
  %551 = vmatpush.bf16.msra.mxu0 0
  %552 = vmatpush.bf16.msra.mxu0 0
  %553 = vmatpush.bf16.msra.mxu0 %v433
  %554 = vmatmul.bf16.gmra.mxu0 %v544
  %v555 = vpop.f32.mrf.mxu0
  %v556 = vadd.f32 0.0, %v555
  %v557 = vpop.f32.mrf.mxu0
  %558 = vdwg.mxu0
  %v559 = vmul.f32 %v194, %v556
  %v560 = vpack.c.bf16 %v559, %v559
  %561 = vmatpush.bf16.msra.mxu0 %v489
  %562 = vmatpush.bf16.msra.mxu0 %v488
  %563 = vmatpush.bf16.msra.mxu0 %v487
  %564 = vmatpush.bf16.msra.mxu0 %v486
  %565 = vmatpush.bf16.msra.mxu0 %v485
  %566 = vmatpush.bf16.msra.mxu0 %v484
  %567 = vmatpush.bf16.msra.mxu0 %v483
  %568 = vmatpush.bf16.msra.mxu0 %v482
  %569 = vmatmul.bf16.gmra.mxu0 %v560
  %v570 = vpop.f32.mrf.mxu0
  %v571 = vadd.f32 0.0, %v570
  %v572 = vpop.f32.mrf.mxu0
  %573 = vdwg.mxu0
  %v574 = vmul.f32 %v571, 0.125
  %v575 = vld [vmem:[%s8 + $0x7] sm:$0x1]
  %577 = vset.pattern.permute.xlu0 0
  %578 = vperm.xlu0 %577, %v297
  %v579 = vpop.permute.xlu0 %578
  %v582 = vperm.slane %v575, 0
  %v584 = vmul.f32 %v579, %v582
  %586 = vrot.lane.b32.xlu0 %v584, 48
  %v587 = vpop.permute.xlu0 %586
  %v589 = vadd.f32 %v214, %v587
  %v590 = vpack.c.bf16 %v314, %v314
  %v591 = vld [vmem:[%s3] sm:$0xf]
  %v592 = vld [vmem:[%s3 + $0xc] sm:$0xf]
  %v595 = vunpack.c.l.b16 %v591
  %v596 = vunpack.c.l.b16 %v592
  %v597 = vpack.c.b16 %v596, %v595
  %v600 = vsel %vm302, %v590, 0
  %602 = vmatpush.bf16.msra.mxu0 0
  %603 = vmatpush.bf16.msra.mxu0 0
  %604 = vmatpush.bf16.msra.mxu0 0
  %605 = vmatpush.bf16.msra.mxu0 0
  %606 = vmatpush.bf16.msra.mxu0 0
  %607 = vmatpush.bf16.msra.mxu0 0
  %608 = vmatpush.bf16.msra.mxu0 0
  %609 = vmatpush.bf16.msra.mxu0 %v597
  %610 = vmatmul.bf16.gmra.mxu0 %v600
  %v611 = vpop.f32.mrf.mxu0
  %v612 = vadd.f32 0.0, %v611
  %v613 = vpop.f32.mrf.mxu0
  %614 = vdwg.mxu0
  %616 = vrot.lane.b32.xlu0 %v612, 48
  %v617 = vpop.permute.xlu0 %616
  %v619 = vadd.f32 %v589, %v617
  %v620 = vpack.c.bf16 %v511, %v511
  %v621 = vld [vmem:[%s3 + $0x4] sm:$0xf]
  %v622 = vld [vmem:[%s3 + $0x10] sm:$0xf]
  %v625 = vunpack.c.l.b16 %v621
  %v626 = vunpack.c.l.b16 %v622
  %v627 = vpack.c.b16 %v626, %v625
  %v630 = vsel %vm302, %v620, 0
  %632 = vmatpush.bf16.msra.mxu0 0
  %633 = vmatpush.bf16.msra.mxu0 0
  %634 = vmatpush.bf16.msra.mxu0 0
  %635 = vmatpush.bf16.msra.mxu0 0
  %636 = vmatpush.bf16.msra.mxu0 0
  %637 = vmatpush.bf16.msra.mxu0 0
  %638 = vmatpush.bf16.msra.mxu0 0
  %639 = vmatpush.bf16.msra.mxu0 %v627
  %640 = vmatmul.bf16.gmra.mxu0 %v630
  %v641 = vpop.f32.mrf.mxu0
  %v642 = vadd.f32 0.0, %v641
  %v643 = vpop.f32.mrf.mxu0
  %644 = vdwg.mxu0
  %646 = vrot.lane.b32.xlu0 %v642, 48
  %v647 = vpop.permute.xlu0 %646
  %v649 = vadd.f32 %v619, %v647
  %v650 = vpack.c.bf16 %v574, %v574
  %v651 = vld [vmem:[%s3 + $0x8] sm:$0xf]
  %v652 = vld [vmem:[%s3 + $0x14] sm:$0xf]
  %v655 = vunpack.c.l.b16 %v651
  %v656 = vunpack.c.l.b16 %v652
  %v657 = vpack.c.b16 %v656, %v655
  %v660 = vsel %vm302, %v650, 0
  %662 = vmatpush.bf16.msra.mxu0 0
  %663 = vmatpush.bf16.msra.mxu0 0
  %664 = vmatpush.bf16.msra.mxu0 0
  %665 = vmatpush.bf16.msra.mxu0 0
  %666 = vmatpush.bf16.msra.mxu0 0
  %667 = vmatpush.bf16.msra.mxu0 0
  %668 = vmatpush.bf16.msra.mxu0 0
  %669 = vmatpush.bf16.msra.mxu0 %v657
  %670 = vmatmul.bf16.gmra.mxu0 %v660
  %v671 = vpop.f32.mrf.mxu0
  %v672 = vadd.f32 0.0, %v671
  %v673 = vpop.f32.mrf.mxu0
  %674 = vdwg.mxu0
  %676 = vrot.lane.b32.xlu0 %v672, 48
  %v677 = vpop.permute.xlu0 %676
  %v679 = vadd.f32 %v649, %v677
  %v680 = vld [vmem:[%s8 + $0x8] sm:$0x1]
  %v682 = vperm.slane %v680, 0
  %683 = vrot.lane.b32.xlu0 %v682, 48
  %v684 = vpop.permute.xlu0 %683
  %v686 = vadd.f32 %v679, %v684
  %v687 = vmax.f32 %v686, 0.0
  %v688 = vpack.c.bf16 %v687, %v687
  %v689 = vld [vmem:[%s6] sm:$0xf]
  %v690 = vld [vmem:[%s6 + $0x4] sm:$0xf]
  %v691 = vld [vmem:[%s6 + $0x8] sm:$0xf]
  %v692 = vld [vmem:[%s6 + $0xc] sm:$0xf]
  %v693 = vld [vmem:[%s6 + $0x10] sm:$0xf]
  %v694 = vld [vmem:[%s6 + $0x14] sm:$0xf]
  %v695 = vld [vmem:[%s6 + $0x18] sm:$0xf]
  %v696 = vld [vmem:[%s8 + $0x9] sm:$0x1]
  %v698 = vperm.slane %v696, 0
  %701 = vrot.lane.b32.xlu0 %v688, 80
  %v702 = vpop.permute.xlu0 %701
  %v710 = vunpack.c.l.b16 %v689
  %v711 = vunpack.c.l.b16 %v690
  %v712 = vunpack.c.l.b16 %v691
  %v713 = vunpack.c.l.b16 %v692
  %v714 = vunpack.c.l.b16 %v693
  %v715 = vunpack.c.l.b16 %v694
  %v716 = vunpack.c.l.b16 %v695
  %v717 = vpack.c.b16 %v711, %v710
  %v718 = vpack.c.b16 %v713, %v712
  %v719 = vpack.c.b16 %v715, %v714
  %v720 = vpack.c.b16 %v716, %v716
  %vm724 = vcmask 457728
  %v726 = vsel %vm724, %v702, 0
  %v729 = vsel %vm431, %v720, 0
  %731 = vmatpush.bf16.msra.mxu0 0
  %732 = vmatpush.bf16.msra.mxu0 0
  %733 = vmatpush.bf16.msra.mxu0 0
  %734 = vmatpush.bf16.msra.mxu0 0
  %735 = vmatpush.bf16.msra.mxu0 %v729
  %736 = vmatpush.bf16.msra.mxu0 %v719
  %737 = vmatpush.bf16.msra.mxu0 %v718
  %738 = vmatpush.bf16.msra.mxu0 %v717
  %739 = vmatmul.bf16.gmra.mxu0 %v726
  %v740 = vpop.f32.mrf.mxu0
  %v741 = vadd.f32 %v698, %v740
  %v742 = vpop.f32.mrf.mxu0
  %743 = vdwg.mxu0
  %v744 = vmax.f32 %v741, 0.0
  %v745 = vpack.c.bf16 %v744, %v744
  %v746 = vld [vmem:[%s7] sm:$0xf]
  %v747 = vld [vmem:[%s7 + $0x4] sm:$0xf]
  %v748 = vld [vmem:[%s7 + $0x8] sm:$0xf]
  %v749 = vld [vmem:[%s7 + $0xc] sm:$0x3]
  %v750 = vld [vmem:[%s8 + $0xa] sm:$0x1]
  %v752 = vperm.slane %v750, 0
  %v758 = vunpack.c.l.b16 %v746
  %v759 = vunpack.c.l.b16 %v747
  %v760 = vunpack.c.l.b16 %v748
  %v761 = vunpack.c.l.b16 %v749
  %v762 = vpack.c.b16 %v759, %v758
  %v763 = vpack.c.b16 %v761, %v760
  %vm765 = vcmask 228352
  %v767 = vsel %vm765, %v745, 0
  %vm769 = vcmask 1045504
  %v771 = vsel %vm769, %v763, 0
  %773 = vmatpush.bf16.msra.mxu0 0
  %774 = vmatpush.bf16.msra.mxu0 0
  %775 = vmatpush.bf16.msra.mxu0 0
  %776 = vmatpush.bf16.msra.mxu0 0
  %777 = vmatpush.bf16.msra.mxu0 0
  %778 = vmatpush.bf16.msra.mxu0 0
  %779 = vmatpush.bf16.msra.mxu0 %v771
  %780 = vmatpush.bf16.msra.mxu0 %v762
  %781 = vmatmul.bf16.gmra.mxu0 %v767
  %v782 = vpop.f32.mrf.mxu0
  %v783 = vadd.f32 %v752, %v782
  %v784 = vpop.f32.mrf.mxu0
  %785 = vdwg.mxu0
  %vm786 = vcmask 7168
  %787 = vst.msk [vmem:[%s9] sm:$0xff] %vm786, %v783
  // Predicated region
  $region38: #{affinity_forward.1} parent=0 // pred_check
    _
  $region39: #{affinity_forward.1} parent=0 // pred_check_branch
    %789 = sbr.rel (0) target = $region41
  $region40: #{affinity_forward.1} parent=0 // pred_region
    _
  $region41: #{affinity_forward.1} parent=0 // pred_fallthru
    _
  // Predicated region
  $region42: #{affinity_forward.1} parent=0 // pred_check
    _
  $region43: #{affinity_forward.1} parent=0 // pred_check_branch
    %791 = sbr.rel (0) target = $region45
  $region44: #{affinity_forward.1} parent=0 // pred_region
    _
  $region45: #{affinity_forward.1} parent=0 // pred_fallthru
    _

</llo_original>
